<compile_context>
chip_gen: v6e
topology: v6e:2x2x1
jax: 0.10.0
libtpu: 0.0.40
codegen_flags: <defaults>
</compile_context>

<pallas_src>
import functools

import jax
import jax.numpy as jnp
from jax.experimental import pallas as pl
from jax.experimental.pallas import tpu as pltpu

LN_EPS = 1e-5  # PyTorch nn.LayerNorm default eps


def _round_up(v, m):
    return (v + m - 1) // m * m


def _fused_kernel(p, x_ref, y_ref, ux_ref, uy_ref, g_ref, beta_ref, wt_ref,
                  b_ref, ox_ref, oy_ref):
    # Parameters are resident in VMEM (constant block index) across the grid.
    gamma = g_ref[...]            # (1, D) f32
    beta = beta_ref[...]          # (1, D) f32
    wt = wt_ref[...]              # (D, D) bf16, pre-transposed: (in, out)
    bias = b_ref[...]             # (1, D) f32

    inv_keep = 1.0 / (1.0 - p) if p > 0.0 else 1.0

    def one_stream(x_r, u_r, o_r):
        x = x_r[...].astype(jnp.float32)                     # (TILE_R, D)

        # ---- LayerNorm over the feature (lane) dim, f32 statistics ----
        mean = jnp.mean(x, axis=-1, keepdims=True)
        xc = x - mean
        var = jnp.mean(xc * xc, axis=-1, keepdims=True)
        h = xc * jax.lax.rsqrt(var + LN_EPS) * gamma + beta  # (TILE_R, D)

        # ---- fn: Linear(D -> D); bf16 MXU inputs, f32 accumulation ----
        out = jnp.dot(h.astype(jnp.bfloat16), wt,
                      preferred_element_type=jnp.float32) + bias

        # ---- Dropout (training-mode semantics: keep w.p. 1-p, scale) ----
        if p > 0.0:
            keep = u_r[...] >= p
            out = jnp.where(keep, out * inv_keep, 0.0)

        o_r[...] = out.astype(o_r.dtype)

    one_stream(x_ref, ux_ref, ox_ref)
    one_stream(y_ref, uy_ref, oy_ref)


def cross_prenorm_drop(x, y, gamma, beta, w, b, p, rng_key, *, tile_r=128):
    """forward(x, y) -> (dropout(fn(norm(x))), dropout(fn(norm(y))))

    `w` is the PyTorch Linear weight with shape (out, in) = (D, D); `b` is the
    bias (D,). Pass p=0.0 for eval-mode (dropout disabled) semantics.
    """
    assert x.shape == y.shape
    B, N, D = x.shape
    R = B * N
    xf = x.reshape(R, D)
    yf = y.reshape(R, D)

    # Dropout uniforms from the standard JAX PRNG (generated once outside the
    # kernel; the in-kernel compare is one VPU op per element).
    # TODO(synk): torch's RNG stream is not reproducible here; same Bernoulli
    # distribution, different draws.
    kx, ky = jax.random.split(rng_key)
    ux = jax.random.uniform(kx, (R, D), dtype=jnp.float32)
    uy = jax.random.uniform(ky, (R, D), dtype=jnp.float32)

    # Pre-transpose the weight once (no in-kernel XLU transpose) and cast to
    # bf16 so the resident VMEM copy is half the size and MXU-native.
    wt = jnp.asarray(w.T, dtype=jnp.bfloat16)                # (in, out)

    # Row tiling: big enough for pipelining, small enough that the
    # double-buffered tiles + resident weight fit every generation's scoped
    # VMEM (v5e 16 MiB default included for D up to ~1k).
    tile_r = min(tile_r, _round_up(R, 8))
    grid = (pl.cdiv(R, tile_r),)

    row_spec = pl.BlockSpec((tile_r, D), lambda i: (i, 0))
    vec_spec = pl.BlockSpec((1, D), lambda i: (0, 0))

    kern = functools.partial(_fused_kernel, float(p))
    out_x, out_y = pl.pallas_call(
        kern,
        out_shape=(jax.ShapeDtypeStruct((R, D), x.dtype),
                   jax.ShapeDtypeStruct((R, D), y.dtype)),
        grid_spec=pltpu.PrefetchScalarGridSpec(
            num_scalar_prefetch=0,
            grid=grid,
            in_specs=[
                row_spec, row_spec,                      # x, y row tiles
                row_spec, row_spec,                      # dropout uniforms
                vec_spec, vec_spec,                      # LayerNorm gamma, beta
                pl.BlockSpec((D, D), lambda i: (0, 0)),  # Wt (resident, bf16)
                vec_spec,                                # Linear bias
            ],
            out_specs=[row_spec, row_spec],
        ),
        compiler_params=pltpu.CompilerParams(
            dimension_semantics=("parallel",),   # megacore sharding on v7x
            vmem_limit_bytes=32 * 1024 * 1024,
        ),
    )(xf, yf, ux, uy, gamma.reshape(1, D), beta.reshape(1, D), wt,
      b.reshape(1, D))

    return out_x.reshape(B, N, D), out_y.reshape(B, N, D)


if __name__ == "__main__":
    B, N, D = 2, 8, 32          # batch, seq, hidden (LayerNorm dim)
    dropout_rate = 0.1

    key = jax.random.PRNGKey(0)
    kx, ky, kg, kb, kw, kbias, kdrop = jax.random.split(key, 7)

    x = jax.random.normal(kx, (B, N, D), dtype=jnp.float32)
    y = jax.random.normal(ky, (B, N, D), dtype=jnp.float32)

    # Deterministic parameter init (synthetic, not a checkpoint load).
    gamma = 1.0 + 0.01 * jax.random.normal(kg, (D,), dtype=jnp.float32)
    beta = 0.01 * jax.random.normal(kb, (D,), dtype=jnp.float32)
    w = jax.random.normal(kw, (D, D), dtype=jnp.float32) / jnp.sqrt(D)
    bias = 0.01 * jax.random.normal(kbias, (D,), dtype=jnp.float32)

    out_x, out_y = cross_prenorm_drop(
        x, y, gamma, beta, w, bias, dropout_rate, kdrop
    )
    jax.block_until_ready((out_x, out_y))

    assert out_x.shape == (B, N, D) and out_y.shape == (B, N, D)
    assert bool(jnp.all(jnp.isfinite(out_x))) and bool(jnp.all(jnp.isfinite(out_y)))
    print("KERNEL_OK")
</pallas_src>

<mosaic_0001>
module attributes {stable_mosaic.version = 11 : i64} {
  func.func @_fused_kernel(%arg0: i32, %arg1: memref<16x32xf32, #tpu.memory_space<vmem>>, %arg2: memref<16x32xf32, #tpu.memory_space<vmem>>, %arg3: memref<16x32xf32, #tpu.memory_space<vmem>>, %arg4: memref<16x32xf32, #tpu.memory_space<vmem>>, %arg5: memref<1x32xf32, #tpu.memory_space<vmem>>, %arg6: memref<1x32xf32, #tpu.memory_space<vmem>>, %arg7: memref<32x32xbf16, #tpu.memory_space<vmem>>, %arg8: memref<1x32xf32, #tpu.memory_space<vmem>>, %arg9: memref<16x32xf32, #tpu.memory_space<vmem>>, %arg10: memref<16x32xf32, #tpu.memory_space<vmem>>) attributes {dimension_semantics = [#tpu.dimension_semantics<parallel>], iteration_bounds = array<i64: 1>, scalar_prefetch = 0 : i64, scratch_operands = 0 : i64, tpu.core_type = #tpu.core_type<tc>, window_params = [{transform_indices = @transform_0, window_bounds = array<i64: 16, 32>}, {transform_indices = @transform_1, window_bounds = array<i64: 16, 32>}, {transform_indices = @transform_2, window_bounds = array<i64: 16, 32>}, {transform_indices = @transform_3, window_bounds = array<i64: 16, 32>}, {pipeline_mode = #tpu.pipeline_mode<synchronous>, transform_indices = @transform_4, window_bounds = array<i64: 1, 32>}, {pipeline_mode = #tpu.pipeline_mode<synchronous>, transform_indices = @transform_5, window_bounds = array<i64: 1, 32>}, {pipeline_mode = #tpu.pipeline_mode<synchronous>, transform_indices = @transform_6, window_bounds = array<i64: 32, 32>}, {pipeline_mode = #tpu.pipeline_mode<synchronous>, transform_indices = @transform_7, window_bounds = array<i64: 1, 32>}, {transform_indices = @transform_8, window_bounds = array<i64: 16, 32>}, {transform_indices = @transform_9, window_bounds = array<i64: 16, 32>}]} {
    %c0 = arith.constant 0 : index
    %c0_0 = arith.constant 0 : index
    %0 = vector.load %arg5[%c0, %c0_0] : memref<1x32xf32, #tpu.memory_space<vmem>>, vector<1x32xf32>
    %c0_1 = arith.constant 0 : index
    %c0_2 = arith.constant 0 : index
    %1 = vector.load %arg6[%c0_1, %c0_2] : memref<1x32xf32, #tpu.memory_space<vmem>>, vector<1x32xf32>
    %c0_3 = arith.constant 0 : index
    %c0_4 = arith.constant 0 : index
    %2 = vector.load %arg7[%c0_3, %c0_4] : memref<32x32xbf16, #tpu.memory_space<vmem>>, vector<32x32xbf16>
    %c0_5 = arith.constant 0 : index
    %c0_6 = arith.constant 0 : index
    %3 = vector.load %arg8[%c0_5, %c0_6] : memref<1x32xf32, #tpu.memory_space<vmem>>, vector<1x32xf32>
    %c0_7 = arith.constant 0 : index
    %c0_8 = arith.constant 0 : index
    %4 = vector.load %arg1[%c0_7, %c0_8] : memref<16x32xf32, #tpu.memory_space<vmem>>, vector<16x32xf32>
    %cst = arith.constant dense<0.000000e+00> : vector<16xf32>
    %5 = vector.multi_reduction <add>, %4, %cst [1] : vector<16x32xf32> to vector<16xf32>
    %6 = vector.shape_cast %5 : vector<16xf32> to vector<16x1xf32>
    %cst_9 = arith.constant 3.200000e+01 : f32
    %7 = vector.broadcast %cst_9 : f32 to vector<16x1xf32>
    %8 = arith.divf %6, %7 : vector<16x1xf32>
    %9 = vector.broadcast %8 : vector<16x1xf32> to vector<16x32xf32>
    %10 = arith.subf %4, %9 : vector<16x32xf32>
    %11 = arith.mulf %10, %10 : vector<16x32xf32>
    %cst_10 = arith.constant dense<0.000000e+00> : vector<16xf32>
    %12 = vector.multi_reduction <add>, %11, %cst_10 [1] : vector<16x32xf32> to vector<16xf32>
    %13 = vector.shape_cast %12 : vector<16xf32> to vector<16x1xf32>
    %cst_11 = arith.constant 3.200000e+01 : f32
    %14 = vector.broadcast %cst_11 : f32 to vector<16x1xf32>
    %15 = arith.divf %13, %14 : vector<16x1xf32>
    %cst_12 = arith.constant 9.99999974E-6 : f32
    %16 = vector.broadcast %cst_12 : f32 to vector<16x1xf32>
    %17 = arith.addf %15, %16 : vector<16x1xf32>
    %18 = math.rsqrt %17 : vector<16x1xf32>
    %19 = vector.broadcast %18 : vector<16x1xf32> to vector<16x32xf32>
    %20 = arith.mulf %10, %19 : vector<16x32xf32>
    %21 = vector.broadcast %0 : vector<1x32xf32> to vector<16x32xf32>
    %22 = arith.mulf %20, %21 : vector<16x32xf32>
    %23 = vector.broadcast %1 : vector<1x32xf32> to vector<16x32xf32>
    %24 = arith.addf %22, %23 : vector<16x32xf32>
    %25 = arith.truncf %24 : vector<16x32xf32> to vector<16x32xbf16>
    %cst_13 = arith.constant dense<0.000000e+00> : vector<16x32xf32>
    %26 = tpu.matmul %25, %2, %cst_13 {dimension_numbers = #tpu.dot_dimension_numbers<[1], [0], [0], [1], [0, 0, 1, 1], [], []>} : vector<16x32xbf16>, vector<32x32xbf16>, vector<16x32xf32> -> vector<16x32xf32>
    %27 = vector.broadcast %3 : vector<1x32xf32> to vector<16x32xf32>
    %28 = arith.addf %26, %27 : vector<16x32xf32>
    %c0_14 = arith.constant 0 : index
    %c0_15 = arith.constant 0 : index
    %29 = vector.load %arg3[%c0_14, %c0_15] : memref<16x32xf32, #tpu.memory_space<vmem>>, vector<16x32xf32>
    %cst_16 = arith.constant 1.000000e-01 : f32
    %30 = vector.broadcast %cst_16 : f32 to vector<16x32xf32>
    %31 = arith.cmpf oge, %29, %30 : vector<16x32xf32>
    %cst_17 = arith.constant 1.11111116 : f32
    %32 = vector.broadcast %cst_17 : f32 to vector<16x32xf32>
    %33 = arith.mulf %28, %32 : vector<16x32xf32>
    %cst_18 = arith.constant 0.000000e+00 : f32
    %34 = vector.broadcast %cst_18 : f32 to vector<16x32xf32>
    %35 = arith.select %31, %33, %34 : vector<16x32xi1>, vector<16x32xf32>
    %c0_19 = arith.constant 0 : index
    %c0_20 = arith.constant 0 : index
    %36 = vector.load %arg9[%c0_19, %c0_20] : memref<16x32xf32, #tpu.memory_space<vmem>>, vector<16x32xf32>
    tpu.vector_store %arg9[%c0_19, %c0_20], %35 {strides = array<i32>} : memref<16x32xf32, #tpu.memory_space<vmem>>, vector<16x32xf32>,
    %c0_21 = arith.constant 0 : index
    %c0_22 = arith.constant 0 : index
    %37 = vector.load %arg2[%c0_21, %c0_22] : memref<16x32xf32, #tpu.memory_space<vmem>>, vector<16x32xf32>
    %cst_23 = arith.constant dense<0.000000e+00> : vector<16xf32>
    %38 = vector.multi_reduction <add>, %37, %cst_23 [1] : vector<16x32xf32> to vector<16xf32>
    %39 = vector.shape_cast %38 : vector<16xf32> to vector<16x1xf32>
    %cst_24 = arith.constant 3.200000e+01 : f32
    %40 = vector.broadcast %cst_24 : f32 to vector<16x1xf32>
    %41 = arith.divf %39, %40 : vector<16x1xf32>
    %42 = vector.broadcast %41 : vector<16x1xf32> to vector<16x32xf32>
    %43 = arith.subf %37, %42 : vector<16x32xf32>
    %44 = arith.mulf %43, %43 : vector<16x32xf32>
    %cst_25 = arith.constant dense<0.000000e+00> : vector<16xf32>
    %45 = vector.multi_reduction <add>, %44, %cst_25 [1] : vector<16x32xf32> to vector<16xf32>
    %46 = vector.shape_cast %45 : vector<16xf32> to vector<16x1xf32>
    %cst_26 = arith.constant 3.200000e+01 : f32
    %47 = vector.broadcast %cst_26 : f32 to vector<16x1xf32>
    %48 = arith.divf %46, %47 : vector<16x1xf32>
    %cst_27 = arith.constant 9.99999974E-6 : f32
    %49 = vector.broadcast %cst_27 : f32 to vector<16x1xf32>
    %50 = arith.addf %48, %49 : vector<16x1xf32>
    %51 = math.rsqrt %50 : vector<16x1xf32>
    %52 = vector.broadcast %51 : vector<16x1xf32> to vector<16x32xf32>
    %53 = arith.mulf %43, %52 : vector<16x32xf32>
    %54 = vector.broadcast %0 : vector<1x32xf32> to vector<16x32xf32>
    %55 = arith.mulf %53, %54 : vector<16x32xf32>
    %56 = vector.broadcast %1 : vector<1x32xf32> to vector<16x32xf32>
    %57 = arith.addf %55, %56 : vector<16x32xf32>
    %58 = arith.truncf %57 : vector<16x32xf32> to vector<16x32xbf16>
    %cst_28 = arith.constant dense<0.000000e+00> : vector<16x32xf32>
    %59 = tpu.matmul %58, %2, %cst_28 {dimension_numbers = #tpu.dot_dimension_numbers<[1], [0], [0], [1], [0, 0, 1, 1], [], []>} : vector<16x32xbf16>, vector<32x32xbf16>, vector<16x32xf32> -> vector<16x32xf32>
    %60 = vector.broadcast %3 : vector<1x32xf32> to vector<16x32xf32>
    %61 = arith.addf %59, %60 : vector<16x32xf32>
    %c0_29 = arith.constant 0 : index
    %c0_30 = arith.constant 0 : index
    %62 = vector.load %arg4[%c0_29, %c0_30] : memref<16x32xf32, #tpu.memory_space<vmem>>, vector<16x32xf32>
    %cst_31 = arith.constant 1.000000e-01 : f32
    %63 = vector.broadcast %cst_31 : f32 to vector<16x32xf32>
    %64 = arith.cmpf oge, %62, %63 : vector<16x32xf32>
    %cst_32 = arith.constant 1.11111116 : f32
    %65 = vector.broadcast %cst_32 : f32 to vector<16x32xf32>
    %66 = arith.mulf %61, %65 : vector<16x32xf32>
    %cst_33 = arith.constant 0.000000e+00 : f32
    %67 = vector.broadcast %cst_33 : f32 to vector<16x32xf32>
    %68 = arith.select %64, %66, %67 : vector<16x32xi1>, vector<16x32xf32>
    %c0_34 = arith.constant 0 : index
    %c0_35 = arith.constant 0 : index
    %69 = vector.load %arg10[%c0_34, %c0_35] : memref<16x32xf32, #tpu.memory_space<vmem>>, vector<16x32xf32>
    tpu.vector_store %arg10[%c0_34, %c0_35], %68 {strides = array<i32>} : memref<16x32xf32, #tpu.memory_space<vmem>>, vector<16x32xf32>,
    return
  }
  func.func @transform_0(%arg0: i32) -> (i32, i32) {
    %c0_i32 = arith.constant 0 : i32
    %c0_i32_0 = arith.constant 0 : i32
    return %arg0, %c0_i32 : i32, i32
  }
  func.func @transform_1(%arg0: i32) -> (i32, i32) {
    %c0_i32 = arith.constant 0 : i32
    %c0_i32_0 = arith.constant 0 : i32
    return %arg0, %c0_i32 : i32, i32
  }
  func.func @transform_2(%arg0: i32) -> (i32, i32) {
    %c0_i32 = arith.constant 0 : i32
    %c0_i32_0 = arith.constant 0 : i32
    return %arg0, %c0_i32 : i32, i32
  }
  func.func @transform_3(%arg0: i32) -> (i32, i32) {
    %c0_i32 = arith.constant 0 : i32
    %c0_i32_0 = arith.constant 0 : i32
    return %arg0, %c0_i32 : i32, i32
  }
  func.func @transform_4(%arg0: i32) -> (i32, i32) {
    %c0_i32 = arith.constant 0 : i32
    %c0_i32_0 = arith.constant 0 : i32
    %c0_i32_1 = arith.constant 0 : i32
    return %c0_i32, %c0_i32_0 : i32, i32
  }
  func.func @transform_5(%arg0: i32) -> (i32, i32) {
    %c0_i32 = arith.constant 0 : i32
    %c0_i32_0 = arith.constant 0 : i32
    %c0_i32_1 = arith.constant 0 : i32
    return %c0_i32, %c0_i32_0 : i32, i32
  }
  func.func @transform_6(%arg0: i32) -> (i32, i32) {
    %c0_i32 = arith.constant 0 : i32
    %c0_i32_0 = arith.constant 0 : i32
    %c0_i32_1 = arith.constant 0 : i32
    return %c0_i32, %c0_i32_0 : i32, i32
  }
  func.func @transform_7(%arg0: i32) -> (i32, i32) {
    %c0_i32 = arith.constant 0 : i32
    %c0_i32_0 = arith.constant 0 : i32
    %c0_i32_1 = arith.constant 0 : i32
    return %c0_i32, %c0_i32_0 : i32, i32
  }
  func.func @transform_8(%arg0: i32) -> (i32, i32) {
    %c0_i32 = arith.constant 0 : i32
    %c0_i32_0 = arith.constant 0 : i32
    return %arg0, %c0_i32 : i32, i32
  }
  func.func @transform_9(%arg0: i32) -> (i32, i32) {
    %c0_i32 = arith.constant 0 : i32
    %c0_i32_0 = arith.constant 0 : i32
    return %arg0, %c0_i32 : i32, i32
  }
}

</mosaic_0001>

<llo_original>
// kernel: tpu_custom_call.1
$region0: #{tpu_custom_call.1}
  #allocation0 [shape = 'u32[]', space=smem, size = 0x4, offset = 0x4, fixed_abs, tag = 'smem constant byte address 0x4 - core index']
  #allocation1 [shape = 'u32[144,128]{1,0:T(1,128)}', space=vmem, size = 0x12000, scoped, tag = 'internal scratch']
  %s0 = inlined_call_operand.hbm [shape: f32[16,32], index: 0, kind: input, shape index: {}]
  %s1 = inlined_call_operand.hbm [shape: f32[16,32], index: 1, kind: input, shape index: {}]
  %s2 = inlined_call_operand.hbm [shape: f32[16,32], index: 2, kind: input, shape index: {}]
  %s3 = inlined_call_operand.hbm [shape: f32[16,32], index: 3, kind: input, shape index: {}]
  %s4 = inlined_call_operand.vmem [shape: f32[1,32], index: 4, kind: input, shape index: {}]
  %s5 = inlined_call_operand.vmem [shape: f32[1,32], index: 5, kind: input, shape index: {}]
  %s6 = inlined_call_operand.hbm [shape: bf16[32,32], index: 6, kind: input, shape index: {}]
  %s7 = inlined_call_operand.vmem [shape: f32[1,32], index: 7, kind: input, shape index: {}]
  %s8 = inlined_call_operand.hbm [shape: f32[16,32], index: 8, kind: output, shape index: {0}]
  %s9 = inlined_call_operand.hbm [shape: f32[16,32], index: 9, kind: output, shape index: {1}]
  %10 = xla_tuple %s8, %s9
  %s11 = sld [smem:[#allocation0]]
  $region70: #{tpu_custom_call.1} parent=0
    _
  %s13 = ssub.s32 1, %s11
  %s14 = scalar_select 0, %s13, %s11
  $region1: #{tpu_custom_call.1} parent=0
    #allocation2 [shape = 'u8[8192]{0}', space=vmem, size = 0x2000, scoped, tag = 'input window, operand 0, single buffered']
    #allocation3 [shape = 's32[1]{0}', space=sflag, size = 0x4, scoped, tag = 'scoped memory for tpu_custom_call.1']
    #allocation4 [shape = 's32[1]{0}', space=sflag, size = 0x4, scoped, tag = 'scoped memory for tpu_custom_call.1']
    #allocation5 [shape = 'u8[8192]{0}', space=vmem, size = 0x2000, scoped, tag = 'input window, operand 1, single buffered']
    #allocation6 [shape = 's32[1]{0}', space=sflag, size = 0x4, scoped, tag = 'scoped memory for tpu_custom_call.1']
    #allocation7 [shape = 'u8[8192]{0}', space=vmem, size = 0x2000, scoped, tag = 'input window, operand 2, single buffered']
    #allocation8 [shape = 'u8[8192]{0}', space=vmem, size = 0x2000, scoped, tag = 'input window, operand 3, single buffered']
    #allocation9 [shape = 's32[1]{0}', space=sflag, size = 0x4, scoped, tag = 'scoped memory for tpu_custom_call.1']
    #allocation10 [shape = 'u8[8192]{0}', space=vmem, size = 0x2000, scoped, tag = 'input window, operand 6, single buffered']
    #allocation11 [shape = 'u8[8192]{0}', space=vmem, size = 0x2000, scoped, tag = 'output window, operand 0, single buffered']
    #allocation12 [shape = 'u8[8192]{0}', space=vmem, size = 0x2000, scoped, tag = 'output window, operand 1, single buffered']
    #allocation13 [shape = 's32[1]{0}', space=sflag, size = 0x4, scoped, tag = 'scoped memory for tpu_custom_call.1']
    %15 = vsyncpa [#allocation3], 0
    %16 = vsyncpa [#allocation6], 0
    %17 = vsyncpa [#allocation9], 0
    %18 = vsyncpa [#allocation4], 0
    %19 = vsyncpa [#allocation13], 0
    // Predicated region
    $region2: #{tpu_custom_call.1} parent=1 // pred_check
      _
    $region3: #{tpu_custom_call.1} parent=1 // pred_check_branch
      %21 = sbr.rel (0) target = $region5
    $region4: #{tpu_custom_call.1} parent=1 // pred_region
      %s23 = ssub.s32 256, 256
      %24 = vsyncadd [#allocation3], %s23
      %s25 = sshll.u32 [#allocation2], 4
      %s26 = int_to_ptr.vmem [resolvable:$true] %s25
      %31 = dma.hbm_to_vmem [thread:$0]  %s0, 256, %s26, [#allocation3], 128, 128, 8
    $region5: #{tpu_custom_call.1} parent=1 // pred_fallthru
      _
    // Predicated region
    $region6: #{tpu_custom_call.1} parent=1 // pred_check
      _
    $region7: #{tpu_custom_call.1} parent=1 // pred_check_branch
      %33 = sbr.rel (0) target = $region9
    $region8: #{tpu_custom_call.1} parent=1 // pred_region
      %s35 = ssub.s32 256, 256
      %36 = vsyncadd [#allocation6], %s35
      %s37 = sshll.u32 [#allocation5], 4
      %s38 = int_to_ptr.vmem [resolvable:$true] %s37
      %43 = dma.hbm_to_vmem [thread:$0]  %s1, 256, %s38, [#allocation6], 128, 128, 8
    $region9: #{tpu_custom_call.1} parent=1 // pred_fallthru
      _
    // Predicated region
    $region10: #{tpu_custom_call.1} parent=1 // pred_check
      _
    $region11: #{tpu_custom_call.1} parent=1 // pred_check_branch
      %45 = sbr.rel (0) target = $region13
    $region12: #{tpu_custom_call.1} parent=1 // pred_region
      %s47 = ssub.s32 256, 256
      %48 = vsyncadd [#allocation6], %s47
      %s49 = sshll.u32 [#allocation7], 4
      %s50 = int_to_ptr.vmem [resolvable:$true] %s49
      %55 = dma.hbm_to_vmem [thread:$0]  %s2, 256, %s50, [#allocation6], 128, 128, 8
    $region13: #{tpu_custom_call.1} parent=1 // pred_fallthru
      _
    // Predicated region
    $region14: #{tpu_custom_call.1} parent=1 // pred_check
      _
    $region15: #{tpu_custom_call.1} parent=1 // pred_check_branch
      %57 = sbr.rel (0) target = $region17
    $region16: #{tpu_custom_call.1} parent=1 // pred_region
      %s59 = ssub.s32 256, 256
      %60 = vsyncadd [#allocation9], %s59
      %s61 = sshll.u32 [#allocation8], 4
      %s62 = int_to_ptr.vmem [resolvable:$true] %s61
      %67 = dma.hbm_to_vmem [thread:$0]  %s3, 256, %s62, [#allocation9], 128, 128, 8
    $region17: #{tpu_custom_call.1} parent=1 // pred_fallthru
      _
    // Predicated region
    $region18: #{tpu_custom_call.1} parent=1 // pred_check
      _
    $region19: #{tpu_custom_call.1} parent=1 // pred_check_branch
      %69 = sbr.rel (0) target = $region21
    $region20: #{tpu_custom_call.1} parent=1 // pred_region
      _
    $region21: #{tpu_custom_call.1} parent=1 // pred_fallthru
      _
    // Predicated region
    $region22: #{tpu_custom_call.1} parent=1 // pred_check
      _
    $region23: #{tpu_custom_call.1} parent=1 // pred_check_branch
      %71 = sbr.rel (0) target = $region25
    $region24: #{tpu_custom_call.1} parent=1 // pred_region
      _
    $region25: #{tpu_custom_call.1} parent=1 // pred_fallthru
      _
    // Predicated region
    $region26: #{tpu_custom_call.1} parent=1 // pred_check
      _
    $region27: #{tpu_custom_call.1} parent=1 // pred_check_branch
      %73 = sbr.rel (0) target = $region29
    $region28: #{tpu_custom_call.1} parent=1 // pred_region
      %s75 = ssub.s32 256, 256
      %76 = vsyncadd [#allocation9], %s75
      %s77 = sshll.u32 [#allocation10], 4
      %s78 = int_to_ptr.vmem [resolvable:$true] %s77
      %83 = dma.hbm_to_vmem [thread:$0]  %s6, 256, %s78, [#allocation9], 64, 64, 4
    $region29: #{tpu_custom_call.1} parent=1 // pred_fallthru
      _
    // Predicated region
    $region30: #{tpu_custom_call.1} parent=1 // pred_check
      _
    $region31: #{tpu_custom_call.1} parent=1 // pred_check_branch
      %85 = sbr.rel (0) target = $region33
    $region32: #{tpu_custom_call.1} parent=1 // pred_region
      _
    $region33: #{tpu_custom_call.1} parent=1 // pred_fallthru
      _
    // Predicated region
    $region34: #{tpu_custom_call.1} parent=1 // pred_check
      _
    $region35: #{tpu_custom_call.1} parent=1 // pred_check_branch
      %87 = sbr.rel (0) target = $region37
    $region36: #{tpu_custom_call.1} parent=1 // pred_region
      %88 = dma.done [#allocation3], 256
    $region37: #{tpu_custom_call.1} parent=1 // pred_fallthru
      _
    // Predicated region
    $region38: #{tpu_custom_call.1} parent=1 // pred_check
      _
    $region39: #{tpu_custom_call.1} parent=1 // pred_check_branch
      %90 = sbr.rel (0) target = $region41
    $region40: #{tpu_custom_call.1} parent=1 // pred_region
      %91 = dma.done [#allocation6], 256
    $region41: #{tpu_custom_call.1} parent=1 // pred_fallthru
      _
    // Predicated region
    $region42: #{tpu_custom_call.1} parent=1 // pred_check
      _
    $region43: #{tpu_custom_call.1} parent=1 // pred_check_branch
      %93 = sbr.rel (0) target = $region45
    $region44: #{tpu_custom_call.1} parent=1 // pred_region
      %94 = dma.done [#allocation6], 256
    $region45: #{tpu_custom_call.1} parent=1 // pred_fallthru
      _
    // Predicated region
    $region46: #{tpu_custom_call.1} parent=1 // pred_check
      _
    $region47: #{tpu_custom_call.1} parent=1 // pred_check_branch
      %96 = sbr.rel (0) target = $region49
    $region48: #{tpu_custom_call.1} parent=1 // pred_region
      %97 = dma.done [#allocation9], 256
    $region49: #{tpu_custom_call.1} parent=1 // pred_fallthru
      _
    // Predicated region
    $region50: #{tpu_custom_call.1} parent=1 // pred_check
      _
    $region51: #{tpu_custom_call.1} parent=1 // pred_check_branch
      %99 = sbr.rel (0) target = $region53
    $region52: #{tpu_custom_call.1} parent=1 // pred_region
      %100 = dma.done [#allocation9], 256
    $region53: #{tpu_custom_call.1} parent=1 // pred_fallthru
      _
    %v102 = vld [vmem:[%s4] sm:$0x1]
    %v103 = vld [vmem:[%s5] sm:$0x1]
    %v104 = vld [vmem:[#allocation10] sm:$0xf]
    %v105 = vld [vmem:[#allocation10 + $0x4] sm:$0xf]
    %v106 = vld [vmem:[#allocation10 + $0x8] sm:$0xf]
    %v107 = vld [vmem:[#allocation10 + $0xc] sm:$0xf]
    %v108 = vld [vmem:[%s7] sm:$0x1]
    %v109 = vld [vmem:[#allocation2] sm:$0xff]
    %v110 = vld [vmem:[#allocation2 + $0x8] sm:$0xff]
    %vm111 = vcmask 261120
    %v112 = vsel %vm111, %v109, 0.0
    %113 = vadd.xlane.f32.xlu0 %v112
    %v114 = vpop.xlane.xlu0 %113
    %v115 = vsel %vm111, %v110, 0.0
    %116 = vadd.xlane.f32.xlu0 %v115
    %v117 = vpop.xlane.xlu0 %116
    %v118 = vrcp.pop 32.0
    %v119 = vmul.f32 %v114, %v118
    %v120 = vmul.f32 %v117, %v118
    %v121 = vsub.f32 %v109, %v119
    %v122 = vsub.f32 %v110, %v120
    %v123 = vmul.f32 %v121, %v121
    %v124 = vmul.f32 %v122, %v122
    %v125 = vsel %vm111, %v123, 0.0
    %126 = vadd.xlane.f32.xlu0 %v125
    %v127 = vpop.xlane.xlu0 %126
    %v128 = vsel %vm111, %v124, 0.0
    %129 = vadd.xlane.f32.xlu0 %v128
    %v130 = vpop.xlane.xlu0 %129
    %v131 = vmul.f32 %v127, %v118
    %v132 = vmul.f32 %v130, %v118
    %v133 = vadd.f32 %v131, 1e-05
    %v134 = vadd.f32 %v132, 1e-05
    %v135 = vrsqrt.pop %v133
    %v136 = vrsqrt.pop %v134
    %v137 = vmul.f32 %v121, %v135
    %v138 = vmul.f32 %v122, %v136
    %v140 = vlaneseq
    %v141 = vshrl.u32 %v140, 7
    %v142 = vsub.s32 0, %v141
    %v143 = vrot.slane %v102, %v142
    %v145 = vmul.f32 %v137, %v143
    %v146 = vmul.f32 %v138, %v143
    %v148 = vlaneseq
    %v149 = vshrl.u32 %v148, 7
    %v150 = vsub.s32 0, %v149
    %v151 = vrot.slane %v103, %v150
    %v153 = vadd.f32 %v145, %v151
    %v154 = vadd.f32 %v146, %v151
    %v155 = vpack.c.bf16 %v154, %v153
    %v157 = vlaneseq
    %v158 = vshrl.u32 %v157, 7
    %v159 = vsub.s32 0, %v158
    %v160 = vrot.slane %v108, %v159
    %v166 = vunpack.c.l.b16 %v104
    %v167 = vunpack.c.l.b16 %v105
    %v168 = vunpack.c.l.b16 %v106
    %v169 = vunpack.c.l.b16 %v107
    %v170 = vpack.c.b16 %v167, %v166
    %v171 = vpack.c.b16 %v169, %v168
    %v175 = vsel %vm111, %v155, 0
    %177 = vmatprep.subr.bf16.mxu0 0
    %178 = vmatpush1.bf16.msra.mxu0 0
    %179 = vmatprep.subr.bf16.mxu0 0
    %180 = vmatpush1.bf16.msra.mxu0 0
    %181 = vmatprep.subr.bf16.mxu0 0
    %182 = vmatpush1.bf16.msra.mxu0 0
    %183 = vmatprep.subr.bf16.mxu0 0
    %184 = vmatpush1.bf16.msra.mxu0 0
    %185 = vmatprep.subr.bf16.mxu0 0
    %186 = vmatpush1.bf16.msra.mxu0 0
    %187 = vmatprep.subr.bf16.mxu0 0
    %188 = vmatpush1.bf16.msra.mxu0 0
    %189 = vmatprep.subr.bf16.mxu0 0
    %190 = vmatpush1.bf16.msra.mxu0 %v171
    %191 = vmatprep.subr.bf16.mxu0 0
    %192 = vmatpush1.bf16.msra.mxu0 %v170
    %193 = vmatprep.subr.bf16.mxu0 0
    %194 = vmatpush2.bf16.msra.mxu0 0
    %195 = vmatprep.subr.bf16.mxu0 0
    %196 = vmatpush2.bf16.msra.mxu0 0
    %197 = vmatprep.subr.bf16.mxu0 0
    %198 = vmatpush2.bf16.msra.mxu0 0
    %199 = vmatprep.subr.bf16.mxu0 0
    %200 = vmatpush2.bf16.msra.mxu0 0
    %201 = vmatprep.subr.bf16.mxu0 0
    %202 = vmatpush2.bf16.msra.mxu0 0
    %203 = vmatprep.subr.bf16.mxu0 0
    %204 = vmatpush2.bf16.msra.mxu0 0
    %205 = vmatprep.subr.bf16.mxu0 0
    %206 = vmatpush2.bf16.msra.mxu0 0
    %207 = vmatprep.subr.bf16.mxu0 0
    %208 = vmatpush2.bf16.msra.mxu0 0
    %209 = vmatprep.mubr.bf16.mxu0 0
    %210 = vmatmul.mubr.bf16.gmra.mxu0 %v175
    %v211 = vpop.f32.mrf.mxu0
    %v212 = vadd.f32 %v160, %v211
    %v213 = vpop.f32.mrf.mxu0
    %v214 = vpop.f32.mrf.mxu0
    %v215 = vadd.f32 %v160, %v214
    %v216 = vpop.f32.mrf.mxu0
    %217 = vdwg.mxu0
    %v218 = vld [vmem:[#allocation7] sm:$0xff]
    %v219 = vld [vmem:[#allocation7 + $0x8] sm:$0xff]
    %vm220 = vcmp.ge.f32.partialorder %v218, 0.1
    %vm221 = vcmp.ge.f32.partialorder %v219, 0.1
    %v222 = vmul.f32 %v212, 1.1111112
    %v223 = vmul.f32 %v215, 1.1111112
    %v224 = vsel %vm220, %v222, 0.0
    %v225 = vsel %vm221, %v223, 0.0
    %226 = vst.msk [vmem:[#allocation11] sm:$0xff] %vm111, %v224
    %227 = vst.msk [vmem:[#allocation11 + $0x8] sm:$0xff] %vm111, %v225
    %v228 = vld [vmem:[#allocation5] sm:$0xff]
    %v229 = vld [vmem:[#allocation5 + $0x8] sm:$0xff]
    %v230 = vsel %vm111, %v228, 0.0
    %231 = vadd.xlane.f32.xlu0 %v230
    %v232 = vpop.xlane.xlu0 %231
    %v233 = vsel %vm111, %v229, 0.0
    %234 = vadd.xlane.f32.xlu0 %v233
    %v235 = vpop.xlane.xlu0 %234
    %v236 = vmul.f32 %v232, %v118
    %v237 = vmul.f32 %v235, %v118
    %v238 = vsub.f32 %v228, %v236
    %v239 = vsub.f32 %v229, %v237
    %v240 = vmul.f32 %v238, %v238
    %v241 = vmul.f32 %v239, %v239
    %v242 = vsel %vm111, %v240, 0.0
    %243 = vadd.xlane.f32.xlu0 %v242
    %v244 = vpop.xlane.xlu0 %243
    %v245 = vsel %vm111, %v241, 0.0
    %246 = vadd.xlane.f32.xlu0 %v245
    %v247 = vpop.xlane.xlu0 %246
    %v248 = vmul.f32 %v244, %v118
    %v249 = vmul.f32 %v247, %v118
    %v250 = vadd.f32 %v248, 1e-05
    %v251 = vadd.f32 %v249, 1e-05
    %v252 = vrsqrt.pop %v250
    %v253 = vrsqrt.pop %v251
    %v254 = vmul.f32 %v238, %v252
    %v255 = vmul.f32 %v239, %v253
    %v256 = vmul.f32 %v254, %v143
    %v257 = vmul.f32 %v255, %v143
    %v258 = vadd.f32 %v256, %v151
    %v259 = vadd.f32 %v257, %v151
    %v260 = vpack.c.bf16 %v259, %v258
    %v262 = vsel %vm111, %v260, 0
    %264 = vmatprep.subr.bf16.mxu0 0
    %265 = vmatpush1.bf16.msra.mxu0 0
    %266 = vmatprep.subr.bf16.mxu0 0
    %267 = vmatpush1.bf16.msra.mxu0 0
    %268 = vmatprep.subr.bf16.mxu0 0
    %269 = vmatpush1.bf16.msra.mxu0 0
    %270 = vmatprep.subr.bf16.mxu0 0
    %271 = vmatpush1.bf16.msra.mxu0 0
    %272 = vmatprep.subr.bf16.mxu0 0
    %273 = vmatpush1.bf16.msra.mxu0 0
    %274 = vmatprep.subr.bf16.mxu0 0
    %275 = vmatpush1.bf16.msra.mxu0 0
    %276 = vmatprep.subr.bf16.mxu0 0
    %277 = vmatpush1.bf16.msra.mxu0 %v171
    %278 = vmatprep.subr.bf16.mxu0 0
    %279 = vmatpush1.bf16.msra.mxu0 %v170
    %280 = vmatprep.subr.bf16.mxu0 0
    %281 = vmatpush2.bf16.msra.mxu0 0
    %282 = vmatprep.subr.bf16.mxu0 0
    %283 = vmatpush2.bf16.msra.mxu0 0
    %284 = vmatprep.subr.bf16.mxu0 0
    %285 = vmatpush2.bf16.msra.mxu0 0
    %286 = vmatprep.subr.bf16.mxu0 0
    %287 = vmatpush2.bf16.msra.mxu0 0
    %288 = vmatprep.subr.bf16.mxu0 0
    %289 = vmatpush2.bf16.msra.mxu0 0
    %290 = vmatprep.subr.bf16.mxu0 0
    %291 = vmatpush2.bf16.msra.mxu0 0
    %292 = vmatprep.subr.bf16.mxu0 0
    %293 = vmatpush2.bf16.msra.mxu0 0
    %294 = vmatprep.subr.bf16.mxu0 0
    %295 = vmatpush2.bf16.msra.mxu0 0
    %296 = vmatprep.mubr.bf16.mxu0 0
    %297 = vmatmul.mubr.bf16.gmra.mxu0 %v262
    %v298 = vpop.f32.mrf.mxu0
    %v299 = vadd.f32 %v160, %v298
    %v300 = vpop.f32.mrf.mxu0
    %v301 = vpop.f32.mrf.mxu0
    %v302 = vadd.f32 %v160, %v301
    %v303 = vpop.f32.mrf.mxu0
    %304 = vdwg.mxu0
    %v305 = vld [vmem:[#allocation8] sm:$0xff]
    %v306 = vld [vmem:[#allocation8 + $0x8] sm:$0xff]
    %vm307 = vcmp.ge.f32.partialorder %v305, 0.1
    %vm308 = vcmp.ge.f32.partialorder %v306, 0.1
    %v309 = vmul.f32 %v299, 1.1111112
    %v310 = vmul.f32 %v302, 1.1111112
    %v311 = vsel %vm307, %v309, 0.0
    %v312 = vsel %vm308, %v310, 0.0
    %313 = vst.msk [vmem:[#allocation12] sm:$0xff] %vm111, %v311
    %314 = vst.msk [vmem:[#allocation12 + $0x8] sm:$0xff] %vm111, %v312
    // Predicated region
    $region54: #{tpu_custom_call.1} parent=1 // pred_check
      _
    $region55: #{tpu_custom_call.1} parent=1 // pred_check_branch
      %316 = sbr.rel (0) target = $region57
    $region56: #{tpu_custom_call.1} parent=1 // pred_region
      %s318 = ssub.s32 256, 256
      %319 = vsyncadd [#allocation4], %s318
      %s320 = sshll.u32 [#allocation11], 4
      %s321 = int_to_ptr.vmem [resolvable:$true] %s320
      %326 = dma.vmem_to_hbm [thread:$0]  %s321, 256, %s8, [#allocation4], 128, 128, 8
    $region57: #{tpu_custom_call.1} parent=1 // pred_fallthru
      _
    // Predicated region
    $region58: #{tpu_custom_call.1} parent=1 // pred_check
      _
    $region59: #{tpu_custom_call.1} parent=1 // pred_check_branch
      %328 = sbr.rel (0) target = $region61
    $region60: #{tpu_custom_call.1} parent=1 // pred_region
      %s330 = ssub.s32 256, 256
      %331 = vsyncadd [#allocation13], %s330
      %s332 = sshll.u32 [#allocation12], 4
      %s333 = int_to_ptr.vmem [resolvable:$true] %s332
      %338 = dma.vmem_to_hbm [thread:$0]  %s333, 256, %s9, [#allocation13], 128, 128, 8
    $region61: #{tpu_custom_call.1} parent=1 // pred_fallthru
      _
    // Predicated region
    $region62: #{tpu_custom_call.1} parent=1 // pred_check
      _
    $region63: #{tpu_custom_call.1} parent=1 // pred_check_branch
      %340 = sbr.rel (0) target = $region65
    $region64: #{tpu_custom_call.1} parent=1 // pred_region
      %341 = dma.done [#allocation4], 256
    $region65: #{tpu_custom_call.1} parent=1 // pred_fallthru
      _
    // Predicated region
    $region66: #{tpu_custom_call.1} parent=1 // pred_check
      _
    $region67: #{tpu_custom_call.1} parent=1 // pred_check_branch
      %343 = sbr.rel (0) target = $region69
    $region68: #{tpu_custom_call.1} parent=1 // pred_region
      %344 = dma.done [#allocation13], 256
    $region69: #{tpu_custom_call.1} parent=1 // pred_fallthru
      _
    %345 = vsyncpa [#allocation3], 1
    %346 = vsyncpa [#allocation6], 1
    %347 = vsyncpa [#allocation9], 1
    %348 = vsyncpa [#allocation4], 1
    %349 = vsyncpa [#allocation13], 1

</llo_original>
